<compile_context>
chip_gen: v5e
topology: v5e:2x2
jax: 0.10.0
libtpu: 0.0.40
codegen_flags: <defaults>
</compile_context>

<pallas_src>
import math
from functools import partial

import jax
import jax.numpy as jnp
from jax import lax
from jax.experimental import pallas as pl
from jax.experimental.pallas import tpu as pltpu


# ----------------------------------------------------------------------------
# Tile-size helpers (fall back to the full dim for tiny / non-aligned shapes,
# which is always a legal block).
# ----------------------------------------------------------------------------
def _pick_tile(dim, preferred):
    for t in preferred:
        if dim >= t and dim % t == 0:
            return t
    return dim


def _pick_head_tile(num_head, dh, Sq, Sk):
    """Pick how many heads to process per attention grid step.

    The block's last dim is h_tile*dh; it must be a multiple of 128 (lane
    dense) or equal the full nh.  Keep the f32 score working set
    (h_tile * Sq * Sk) under ~8 MiB so it fits the scoped VMEM budget on
    every generation (v5e/v6e/v7x)."""
    budget_elems = (8 * 1024 * 1024) // 4
    legal = [h for h in range(1, num_head + 1)
             if num_head % h == 0 and ((h * dh) % 128 == 0 or h == num_head)]
    within = [h for h in legal if h * Sq * Sk <= budget_elems]
    if within:
        return max(within)
    return min(legal)


# ----------------------------------------------------------------------------
# Kernel 1: tiled linear projection  y = x @ W.T   (PyTorch Linear, bias=False)
#           (weight is pre-transposed in the wrapper -> kernel does x @ Wt)
# ----------------------------------------------------------------------------
def _linear_kernel(x_ref, wt_ref, o_ref, acc_ref):
    @pl.when(pl.program_id(2) == 0)
    def _():
        acc_ref[...] = jnp.zeros_like(acc_ref)

    acc_ref[...] += jnp.dot(
        x_ref[...], wt_ref[...], preferred_element_type=jnp.float32
    )

    @pl.when(pl.program_id(2) == pl.num_programs(2) - 1)
    def _():
        o_ref[...] = acc_ref[...].astype(o_ref.dtype)


def pallas_linear(x, w, compute_dtype=None):
    """x: (M, Din), w: (Dout, Din) (PyTorch layout) -> (M, Dout)."""
    if compute_dtype is not None:
        x = x.astype(compute_dtype)
        w = w.astype(compute_dtype)
    wt = w.T                                  # one-time layout cost, outside kernel
    M, Din = x.shape
    Dout = wt.shape[1]

    tm = _pick_tile(M, (256, 128))
    tn = _pick_tile(Dout, (256, 128))
    tk = _pick_tile(Din, (512, 256, 128))
    grid = (M // tm, Dout // tn, Din // tk)

    return pl.pallas_call(
        _linear_kernel,
        out_shape=jax.ShapeDtypeStruct((M, Dout), x.dtype),
        grid_spec=pltpu.PrefetchScalarGridSpec(
            num_scalar_prefetch=0,
            grid=grid,
            in_specs=[
                pl.BlockSpec((tm, tk), lambda i, j, k: (i, k)),
                pl.BlockSpec((tk, tn), lambda i, j, k: (k, j)),
            ],
            out_specs=pl.BlockSpec((tm, tn), lambda i, j, k: (i, j)),
            scratch_shapes=[pltpu.VMEM((tm, tn), jnp.float32)],
        ),
        compiler_params=pltpu.CompilerParams(
            dimension_semantics=("parallel", "parallel", "arbitrary")
        ),
    )(x, wt)


# ----------------------------------------------------------------------------
# Kernel 2: scaled dot-product attention.
#   Grid = (batch, head-block).  Head split/merge is done by the BlockSpec
#   index_map over the folded (B, S, H*dh) layout; h_tile heads are processed
#   per step and written back as one lane-dense slab.
# ----------------------------------------------------------------------------
def _attn_kernel(q_ref, k_ref, v_ref, o_ref, *, h_tile, dh):
    q = q_ref[0]                               # (Sq, h_tile*dh)
    k = k_ref[0]                               # (Sk, h_tile*dh)
    v = v_ref[0]                               # (Sk, h_tile*dh)
    scale = 1.0 / math.sqrt(dh)

    outs = []
    for h in range(h_tile):                    # static unroll over heads in block
        lo = h * dh
        qh = q[:, lo:lo + dh]                  # (Sq, dh)  static lane slice
        kh = k[:, lo:lo + dh]                  # (Sk, dh)
        vh = v[:, lo:lo + dh]                  # (Sk, dh)

        # contract shared last dim directly (no k.T materialization)
        s = lax.dot_general(
            qh, kh, (((1,), (1,)), ((), ())),
            preferred_element_type=jnp.float32,
        ) * scale                              # (Sq, Sk), f32

        # numerically stable softmax over keys, f32 math
        m = jnp.max(s, axis=-1, keepdims=True)
        p = jnp.exp(s - m)
        denom = jnp.sum(p, axis=-1, keepdims=True)
        p = p * pl.reciprocal(denom, approx=True)

        outs.append(
            jnp.dot(p.astype(vh.dtype), vh, preferred_element_type=jnp.float32)
        )                                      # (Sq, dh), f32

    out = outs[0] if len(outs) == 1 else jnp.concatenate(outs, axis=-1)
    o_ref[0] = out.astype(o_ref.dtype)         # lane-dense (Sq, h_tile*dh) store


def pallas_attention(q, k, v, num_head):
    """q: (B, Sq, nh), k/v: (B, Sk, nh) in head-folded layout -> (B, Sq, nh)."""
    B, Sq, nh = q.shape
    _, Sk, _ = k.shape
    dh = nh // num_head
    h_tile = _pick_head_tile(num_head, dh, Sq, Sk)
    blk = h_tile * dh
    grid = (B, num_head // h_tile)

    kernel = partial(_attn_kernel, h_tile=h_tile, dh=dh)
    return pl.pallas_call(
        kernel,
        out_shape=jax.ShapeDtypeStruct((B, Sq, nh), q.dtype),
        grid_spec=pltpu.PrefetchScalarGridSpec(
            num_scalar_prefetch=0,
            grid=grid,
            in_specs=[
                pl.BlockSpec((1, Sq, blk), lambda b, h: (b, 0, h)),
                pl.BlockSpec((1, Sk, blk), lambda b, h: (b, 0, h)),
                pl.BlockSpec((1, Sk, blk), lambda b, h: (b, 0, h)),
            ],
            out_specs=pl.BlockSpec((1, Sq, blk), lambda b, h: (b, 0, h)),
        ),
        compiler_params=pltpu.CompilerParams(
            dimension_semantics=("parallel", "parallel")
        ),
    )(q, k, v)


# ----------------------------------------------------------------------------
# Full module forward (no head transposes in the wrapper; they are fused into
# the attention BlockSpec index_map).
# ----------------------------------------------------------------------------
def multi_head_attention(queries, keys, values, params, num_head,
                         compute_dtype=None):
    """queries: (B, Sq, Dq), keys: (B, Sk, Dk), values: (B, Sk, Dv)."""
    Wq, Wk, Wv, Wo = params
    B, Sq, Dq = queries.shape
    _, Sk, Dk = keys.shape
    _, _, Dv = values.shape
    nh = Wq.shape[0]                           # number_hiddens

    # W_q / W_k / W_v projections -> head-folded layout (B, S, H*dh)
    q = pallas_linear(queries.reshape(B * Sq, Dq), Wq, compute_dtype).reshape(B, Sq, nh)
    k = pallas_linear(keys.reshape(B * Sk, Dk), Wk, compute_dtype).reshape(B, Sk, nh)
    v = pallas_linear(values.reshape(B * Sk, Dv), Wv, compute_dtype).reshape(B, Sk, nh)

    # dot-product attention (valid_len=None; head split fused into BlockSpecs)
    out = pallas_attention(q, k, v, num_head)   # (B, Sq, nh)

    # W_o projection
    out = pallas_linear(out.reshape(B * Sq, nh), Wo, compute_dtype).reshape(B, Sq, nh)
    return out


# ----------------------------------------------------------------------------
# Pure-JAX reference
# ----------------------------------------------------------------------------
def reference_mha(queries, keys, values, params, num_head):
    Wq, Wk, Wv, Wo = params
    B, Sq, _ = queries.shape
    _, Sk, _ = keys.shape
    nh = Wq.shape[0]
    dh = nh // num_head

    q = (queries @ Wq.T).reshape(B, Sq, num_head, dh).transpose(0, 2, 1, 3)
    k = (keys @ Wk.T).reshape(B, Sk, num_head, dh).transpose(0, 2, 1, 3)
    v = (values @ Wv.T).reshape(B, Sk, num_head, dh).transpose(0, 2, 1, 3)

    scores = jnp.einsum("bhqd,bhkd->bhqk", q, k) / math.sqrt(dh)
    p = jax.nn.softmax(scores, axis=-1)
    o = jnp.einsum("bhqk,bhkd->bhqd", p, v)
    o = o.transpose(0, 2, 1, 3).reshape(B, Sq, nh)
    return o @ Wo.T


if __name__ == "__main__":
    # Small shapes consistent with the module's forward.
    B = 2
    Sq = Sk = 8
    query_size = key_size = value_size = 32
    num_head = 4
    number_hiddens = 32

    key = jax.random.PRNGKey(0)
    kq, kk, kv, k1, k2, k3, k4 = jax.random.split(key, 7)

    queries = jax.random.normal(kq, (B, Sq, query_size), dtype=jnp.float32)
    keys = jax.random.normal(kk, (B, Sk, key_size), dtype=jnp.float32)
    values = jax.random.normal(kv, (B, Sk, value_size), dtype=jnp.float32)

    # PyTorch Linear weight layout: (out_features, in_features).
    def init_w(rng, out_f, in_f):
        bound = 1.0 / math.sqrt(in_f)
        return jax.random.uniform(
            rng, (out_f, in_f), dtype=jnp.float32, minval=-bound, maxval=bound
        )

    Wq = init_w(k1, number_hiddens, query_size)
    Wk = init_w(k2, number_hiddens, key_size)
    Wv = init_w(k3, number_hiddens, value_size)
    Wo = init_w(k4, number_hiddens, number_hiddens)
    params = (Wq, Wk, Wv, Wo)

    mha = jax.jit(multi_head_attention, static_argnums=(4, 5))
    ref = reference_mha(queries, keys, values, params, num_head)

    # f32 path (approx reciprocal in softmax -> moderate tolerance)
    out_f32 = jax.block_until_ready(
        mha(queries, keys, values, params, num_head, None)
    )
    assert out_f32.shape == (B, Sq, number_hiddens)
    assert jnp.allclose(out_f32, ref, atol=2e-2, rtol=2e-2), \
        float(jnp.max(jnp.abs(out_f32 - ref)))

    # bf16 compute path (f32 accumulation / softmax), looser tolerance
    out_bf16 = jax.block_until_ready(
        mha(queries, keys, values, params, num_head, jnp.bfloat16)
    )
    assert out_bf16.shape == (B, Sq, number_hiddens)
    assert jnp.allclose(out_bf16.astype(jnp.float32), ref, atol=6e-2, rtol=6e-2), \
        float(jnp.max(jnp.abs(out_bf16.astype(jnp.float32) - ref)))

    print("KERNEL_OK")
</pallas_src>

<mosaic_0001>
module attributes {stable_mosaic.version = 11 : i64} {
  func.func @_linear_kernel(%arg0: i32, %arg1: i32, %arg2: i32, %arg3: memref<16x32xf32, #tpu.memory_space<vmem>>, %arg4: memref<32x32xf32, #tpu.memory_space<vmem>>, %arg5: memref<16x32xf32, #tpu.memory_space<vmem>>, %arg6: memref<16x32xf32, #tpu.memory_space<vmem>>) attributes {dimension_semantics = [#tpu.dimension_semantics<parallel>, #tpu.dimension_semantics<parallel>, #tpu.dimension_semantics<arbitrary>], iteration_bounds = array<i64: 1, 1, 1>, scalar_prefetch = 0 : i64, scratch_operands = 1 : i64, tpu.core_type = #tpu.core_type<tc>, window_params = [{transform_indices = @transform_0, window_bounds = array<i64: 16, 32>}, {transform_indices = @transform_1, window_bounds = array<i64: 32, 32>}, {transform_indices = @transform_2, window_bounds = array<i64: 16, 32>}]} {
    %c0_i32 = arith.constant 0 : i32
    %0 = arith.cmpi eq, %arg2, %c0_i32 : i32
    %1 = arith.extui %0 : i1 to i32
    %c0_i32_0 = arith.constant 0 : i32
    %2 = arith.cmpi ne, %1, %c0_i32_0 : i32
    scf.if %2 {
      %cst_10 = arith.constant 0.000000e+00 : f32
      %12 = vector.broadcast %cst_10 : f32 to vector<16x32xf32>
      %c0_11 = arith.constant 0 : index
      %c0_12 = arith.constant 0 : index
      %13 = vector.load %arg6[%c0_11, %c0_12] : memref<16x32xf32, #tpu.memory_space<vmem>>, vector<16x32xf32>
      tpu.vector_store %arg6[%c0_11, %c0_12], %12 {strides = array<i32>} : memref<16x32xf32, #tpu.memory_space<vmem>>, vector<16x32xf32>,
    } else {
    }
    %c0 = arith.constant 0 : index
    %c0_1 = arith.constant 0 : index
    %3 = vector.load %arg6[%c0, %c0_1] : memref<16x32xf32, #tpu.memory_space<vmem>>, vector<16x32xf32>
    %c0_2 = arith.constant 0 : index
    %c0_3 = arith.constant 0 : index
    %4 = vector.load %arg3[%c0_2, %c0_3] : memref<16x32xf32, #tpu.memory_space<vmem>>, vector<16x32xf32>
    %c0_4 = arith.constant 0 : index
    %c0_5 = arith.constant 0 : index
    %5 = vector.load %arg4[%c0_4, %c0_5] : memref<32x32xf32, #tpu.memory_space<vmem>>, vector<32x32xf32>
    %cst = arith.constant dense<0.000000e+00> : vector<16x32xf32>
    %6 = tpu.matmul %4, %5, %cst {dimension_numbers = #tpu.dot_dimension_numbers<[1], [0], [0], [1], [0, 0, 1, 1], [], []>} : vector<16x32xf32>, vector<32x32xf32>, vector<16x32xf32> -> vector<16x32xf32>
    %7 = arith.addf %3, %6 : vector<16x32xf32>
    %c0_6 = arith.constant 0 : index
    %c0_7 = arith.constant 0 : index
    %8 = vector.load %arg6[%c0_6, %c0_7] : memref<16x32xf32, #tpu.memory_space<vmem>>, vector<16x32xf32>
    tpu.vector_store %arg6[%c0_6, %c0_7], %7 {strides = array<i32>} : memref<16x32xf32, #tpu.memory_space<vmem>>, vector<16x32xf32>,
    %c0_i32_8 = arith.constant 0 : i32
    %9 = arith.cmpi eq, %arg2, %c0_i32_8 : i32
    %10 = arith.extui %9 : i1 to i32
    %c0_i32_9 = arith.constant 0 : i32
    %11 = arith.cmpi ne, %10, %c0_i32_9 : i32
    scf.if %11 {
      %c0_10 = arith.constant 0 : index
      %c0_11 = arith.constant 0 : index
      %12 = vector.load %arg6[%c0_10, %c0_11] : memref<16x32xf32, #tpu.memory_space<vmem>>, vector<16x32xf32>
      %c0_12 = arith.constant 0 : index
      %c0_13 = arith.constant 0 : index
      %13 = vector.load %arg5[%c0_12, %c0_13] : memref<16x32xf32, #tpu.memory_space<vmem>>, vector<16x32xf32>
      tpu.vector_store %arg5[%c0_12, %c0_13], %12 {strides = array<i32>} : memref<16x32xf32, #tpu.memory_space<vmem>>, vector<16x32xf32>,
    } else {
    }
    return
  }
  func.func @transform_0(%arg0: i32, %arg1: i32, %arg2: i32) -> (i32, i32) {
    %c0_i32 = arith.constant 0 : i32
    return %arg0, %arg2 : i32, i32
  }
  func.func @transform_1(%arg0: i32, %arg1: i32, %arg2: i32) -> (i32, i32) {
    %c0_i32 = arith.constant 0 : i32
    return %arg2, %arg1 : i32, i32
  }
  func.func @transform_2(%arg0: i32, %arg1: i32, %arg2: i32) -> (i32, i32) {
    %c0_i32 = arith.constant 0 : i32
    return %arg0, %arg1 : i32, i32
  }
}

module attributes {stable_mosaic.version = 11 : i64} {
  func.func @_attn_kernel(%arg0: i32, %arg1: i32, %arg2: memref<1x8x32xf32, #tpu.memory_space<vmem>>, %arg3: memref<1x8x32xf32, #tpu.memory_space<vmem>>, %arg4: memref<1x8x32xf32, #tpu.memory_space<vmem>>, %arg5: memref<1x8x32xf32, #tpu.memory_space<vmem>>) attributes {dimension_semantics = [#tpu.dimension_semantics<parallel>, #tpu.dimension_semantics<parallel>], iteration_bounds = array<i64: 2, 1>, scalar_prefetch = 0 : i64, scratch_operands = 0 : i64, tpu.core_type = #tpu.core_type<tc>, window_params = [{transform_indices = @transform_0, window_bounds = array<i64: 1, 8, 32>}, {transform_indices = @transform_1, window_bounds = array<i64: 1, 8, 32>}, {transform_indices = @transform_2, window_bounds = array<i64: 1, 8, 32>}, {transform_indices = @transform_3, window_bounds = array<i64: 1, 8, 32>}]} {
    %c0 = arith.constant 0 : index
    %c0_0 = arith.constant 0 : index
    %c0_1 = arith.constant 0 : index
    %0 = vector.load %arg2[%c0, %c0_0, %c0_1] : memref<1x8x32xf32, #tpu.memory_space<vmem>>, vector<1x8x32xf32>
    %1 = vector.shape_cast %0 : vector<1x8x32xf32> to vector<8x32xf32>
    %c0_2 = arith.constant 0 : index
    %c0_3 = arith.constant 0 : index
    %c0_4 = arith.constant 0 : index
    %2 = vector.load %arg3[%c0_2, %c0_3, %c0_4] : memref<1x8x32xf32, #tpu.memory_space<vmem>>, vector<1x8x32xf32>
    %3 = vector.shape_cast %2 : vector<1x8x32xf32> to vector<8x32xf32>
    %c0_5 = arith.constant 0 : index
    %c0_6 = arith.constant 0 : index
    %c0_7 = arith.constant 0 : index
    %4 = vector.load %arg4[%c0_5, %c0_6, %c0_7] : memref<1x8x32xf32, #tpu.memory_space<vmem>>, vector<1x8x32xf32>
    %5 = vector.shape_cast %4 : vector<1x8x32xf32> to vector<8x32xf32>
    %6 = vector.extract_strided_slice %1 {offsets = [0, 0], sizes = [8, 8], strides = [1, 1]} : vector<8x32xf32> to vector<8x8xf32>
    %7 = vector.extract_strided_slice %3 {offsets = [0, 0], sizes = [8, 8], strides = [1, 1]} : vector<8x32xf32> to vector<8x8xf32>
    %8 = vector.extract_strided_slice %5 {offsets = [0, 0], sizes = [8, 8], strides = [1, 1]} : vector<8x32xf32> to vector<8x8xf32>
    %cst = arith.constant dense<0.000000e+00> : vector<8x8xf32>
    %9 = tpu.matmul %6, %7, %cst {dimension_numbers = #tpu.dot_dimension_numbers<[1], [1], [0], [0], [0, 0, 1, 0], [], []>} : vector<8x8xf32>, vector<8x8xf32>, vector<8x8xf32> -> vector<8x8xf32>
    %cst_8 = arith.constant 0.353553385 : f32
    %10 = vector.broadcast %cst_8 : f32 to vector<8x8xf32>
    %11 = arith.mulf %9, %10 : vector<8x8xf32>
    %cst_9 = arith.constant dense<0xFF800000> : vector<8xf32>
    %12 = vector.multi_reduction <maximumf>, %11, %cst_9 [1] : vector<8x8xf32> to vector<8xf32>
    %13 = vector.shape_cast %12 : vector<8xf32> to vector<8x1xf32>
    %14 = vector.broadcast %13 : vector<8x1xf32> to vector<8x8xf32>
    %15 = arith.subf %11, %14 : vector<8x8xf32>
    %16 = math.exp %15 : vector<8x8xf32>
    %cst_10 = arith.constant dense<0.000000e+00> : vector<8xf32>
    %17 = vector.multi_reduction <add>, %16, %cst_10 [1] : vector<8x8xf32> to vector<8xf32>
    %18 = vector.shape_cast %17 : vector<8xf32> to vector<8x1xf32>
    %19 = tpu.reciprocal %18 {approx = true} : vector<8x1xf32> -> vector<8x1xf32>
    %20 = vector.broadcast %19 : vector<8x1xf32> to vector<8x8xf32>
    %21 = arith.mulf %16, %20 : vector<8x8xf32>
    %cst_11 = arith.constant dense<0.000000e+00> : vector<8x8xf32>
    %22 = tpu.matmul %21, %8, %cst_11 {dimension_numbers = #tpu.dot_dimension_numbers<[1], [0], [0], [1], [0, 0, 1, 1], [], []>} : vector<8x8xf32>, vector<8x8xf32>, vector<8x8xf32> -> vector<8x8xf32>
    %23 = vector.extract_strided_slice %1 {offsets = [0, 8], sizes = [8, 8], strides = [1, 1]} : vector<8x32xf32> to vector<8x8xf32>
    %24 = vector.extract_strided_slice %3 {offsets = [0, 8], sizes = [8, 8], strides = [1, 1]} : vector<8x32xf32> to vector<8x8xf32>
    %25 = vector.extract_strided_slice %5 {offsets = [0, 8], sizes = [8, 8], strides = [1, 1]} : vector<8x32xf32> to vector<8x8xf32>
    %cst_12 = arith.constant dense<0.000000e+00> : vector<8x8xf32>
    %26 = tpu.matmul %23, %24, %cst_12 {dimension_numbers = #tpu.dot_dimension_numbers<[1], [1], [0], [0], [0, 0, 1, 0], [], []>} : vector<8x8xf32>, vector<8x8xf32>, vector<8x8xf32> -> vector<8x8xf32>
    %cst_13 = arith.constant 0.353553385 : f32
    %27 = vector.broadcast %cst_13 : f32 to vector<8x8xf32>
    %28 = arith.mulf %26, %27 : vector<8x8xf32>
    %cst_14 = arith.constant dense<0xFF800000> : vector<8xf32>
    %29 = vector.multi_reduction <maximumf>, %28, %cst_14 [1] : vector<8x8xf32> to vector<8xf32>
    %30 = vector.shape_cast %29 : vector<8xf32> to vector<8x1xf32>
    %31 = vector.broadcast %30 : vector<8x1xf32> to vector<8x8xf32>
    %32 = arith.subf %28, %31 : vector<8x8xf32>
    %33 = math.exp %32 : vector<8x8xf32>
    %cst_15 = arith.constant dense<0.000000e+00> : vector<8xf32>
    %34 = vector.multi_reduction <add>, %33, %cst_15 [1] : vector<8x8xf32> to vector<8xf32>
    %35 = vector.shape_cast %34 : vector<8xf32> to vector<8x1xf32>
    %36 = tpu.reciprocal %35 {approx = true} : vector<8x1xf32> -> vector<8x1xf32>
    %37 = vector.broadcast %36 : vector<8x1xf32> to vector<8x8xf32>
    %38 = arith.mulf %33, %37 : vector<8x8xf32>
    %cst_16 = arith.constant dense<0.000000e+00> : vector<8x8xf32>
    %39 = tpu.matmul %38, %25, %cst_16 {dimension_numbers = #tpu.dot_dimension_numbers<[1], [0], [0], [1], [0, 0, 1, 1], [], []>} : vector<8x8xf32>, vector<8x8xf32>, vector<8x8xf32> -> vector<8x8xf32>
    %40 = vector.extract_strided_slice %1 {offsets = [0, 16], sizes = [8, 8], strides = [1, 1]} : vector<8x32xf32> to vector<8x8xf32>
    %41 = vector.extract_strided_slice %3 {offsets = [0, 16], sizes = [8, 8], strides = [1, 1]} : vector<8x32xf32> to vector<8x8xf32>
    %42 = vector.extract_strided_slice %5 {offsets = [0, 16], sizes = [8, 8], strides = [1, 1]} : vector<8x32xf32> to vector<8x8xf32>
    %cst_17 = arith.constant dense<0.000000e+00> : vector<8x8xf32>
    %43 = tpu.matmul %40, %41, %cst_17 {dimension_numbers = #tpu.dot_dimension_numbers<[1], [1], [0], [0], [0, 0, 1, 0], [], []>} : vector<8x8xf32>, vector<8x8xf32>, vector<8x8xf32> -> vector<8x8xf32>
    %cst_18 = arith.constant 0.353553385 : f32
    %44 = vector.broadcast %cst_18 : f32 to vector<8x8xf32>
    %45 = arith.mulf %43, %44 : vector<8x8xf32>
    %cst_19 = arith.constant dense<0xFF800000> : vector<8xf32>
    %46 = vector.multi_reduction <maximumf>, %45, %cst_19 [1] : vector<8x8xf32> to vector<8xf32>
    %47 = vector.shape_cast %46 : vector<8xf32> to vector<8x1xf32>
    %48 = vector.broadcast %47 : vector<8x1xf32> to vector<8x8xf32>
    %49 = arith.subf %45, %48 : vector<8x8xf32>
    %50 = math.exp %49 : vector<8x8xf32>
    %cst_20 = arith.constant dense<0.000000e+00> : vector<8xf32>
    %51 = vector.multi_reduction <add>, %50, %cst_20 [1] : vector<8x8xf32> to vector<8xf32>
    %52 = vector.shape_cast %51 : vector<8xf32> to vector<8x1xf32>
    %53 = tpu.reciprocal %52 {approx = true} : vector<8x1xf32> -> vector<8x1xf32>
    %54 = vector.broadcast %53 : vector<8x1xf32> to vector<8x8xf32>
    %55 = arith.mulf %50, %54 : vector<8x8xf32>
    %cst_21 = arith.constant dense<0.000000e+00> : vector<8x8xf32>
    %56 = tpu.matmul %55, %42, %cst_21 {dimension_numbers = #tpu.dot_dimension_numbers<[1], [0], [0], [1], [0, 0, 1, 1], [], []>} : vector<8x8xf32>, vector<8x8xf32>, vector<8x8xf32> -> vector<8x8xf32>
    %57 = vector.extract_strided_slice %1 {offsets = [0, 24], sizes = [8, 8], strides = [1, 1]} : vector<8x32xf32> to vector<8x8xf32>
    %58 = vector.extract_strided_slice %3 {offsets = [0, 24], sizes = [8, 8], strides = [1, 1]} : vector<8x32xf32> to vector<8x8xf32>
    %59 = vector.extract_strided_slice %5 {offsets = [0, 24], sizes = [8, 8], strides = [1, 1]} : vector<8x32xf32> to vector<8x8xf32>
    %cst_22 = arith.constant dense<0.000000e+00> : vector<8x8xf32>
    %60 = tpu.matmul %57, %58, %cst_22 {dimension_numbers = #tpu.dot_dimension_numbers<[1], [1], [0], [0], [0, 0, 1, 0], [], []>} : vector<8x8xf32>, vector<8x8xf32>, vector<8x8xf32> -> vector<8x8xf32>
    %cst_23 = arith.constant 0.353553385 : f32
    %61 = vector.broadcast %cst_23 : f32 to vector<8x8xf32>
    %62 = arith.mulf %60, %61 : vector<8x8xf32>
    %cst_24 = arith.constant dense<0xFF800000> : vector<8xf32>
    %63 = vector.multi_reduction <maximumf>, %62, %cst_24 [1] : vector<8x8xf32> to vector<8xf32>
    %64 = vector.shape_cast %63 : vector<8xf32> to vector<8x1xf32>
    %65 = vector.broadcast %64 : vector<8x1xf32> to vector<8x8xf32>
    %66 = arith.subf %62, %65 : vector<8x8xf32>
    %67 = math.exp %66 : vector<8x8xf32>
    %cst_25 = arith.constant dense<0.000000e+00> : vector<8xf32>
    %68 = vector.multi_reduction <add>, %67, %cst_25 [1] : vector<8x8xf32> to vector<8xf32>
    %69 = vector.shape_cast %68 : vector<8xf32> to vector<8x1xf32>
    %70 = tpu.reciprocal %69 {approx = true} : vector<8x1xf32> -> vector<8x1xf32>
    %71 = vector.broadcast %70 : vector<8x1xf32> to vector<8x8xf32>
    %72 = arith.mulf %67, %71 : vector<8x8xf32>
    %cst_26 = arith.constant dense<0.000000e+00> : vector<8x8xf32>
    %73 = tpu.matmul %72, %59, %cst_26 {dimension_numbers = #tpu.dot_dimension_numbers<[1], [0], [0], [1], [0, 0, 1, 1], [], []>} : vector<8x8xf32>, vector<8x8xf32>, vector<8x8xf32> -> vector<8x8xf32>
    %74 = tpu.concatenate %22, %39, %56, %73 in 1 : vector<8x8xf32>, vector<8x8xf32>, vector<8x8xf32>, vector<8x8xf32> -> vector<8x32xf32>
    %c0_27 = arith.constant 0 : index
    %c0_28 = arith.constant 0 : index
    %c0_29 = arith.constant 0 : index
    %75 = vector.load %arg5[%c0_27, %c0_28, %c0_29] : memref<1x8x32xf32, #tpu.memory_space<vmem>>, vector<1x8x32xf32>
    %76 = vector.shape_cast %75 : vector<1x8x32xf32> to vector<8x32xf32>
    %77 = vector.shape_cast %74 : vector<8x32xf32> to vector<1x8x32xf32>
    tpu.vector_store %arg5[%c0_27, %c0_28, %c0_29], %77 {strides = array<i32>} : memref<1x8x32xf32, #tpu.memory_space<vmem>>, vector<1x8x32xf32>,
    return
  }
  func.func @transform_0(%arg0: i32, %arg1: i32) -> (i32, i32, i32) {
    %c0_i32 = arith.constant 0 : i32
    %c0_i32_0 = arith.constant 0 : i32
    return %arg0, %c0_i32, %arg1 : i32, i32, i32
  }
  func.func @transform_1(%arg0: i32, %arg1: i32) -> (i32, i32, i32) {
    %c0_i32 = arith.constant 0 : i32
    %c0_i32_0 = arith.constant 0 : i32
    return %arg0, %c0_i32, %arg1 : i32, i32, i32
  }
  func.func @transform_2(%arg0: i32, %arg1: i32) -> (i32, i32, i32) {
    %c0_i32 = arith.constant 0 : i32
    %c0_i32_0 = arith.constant 0 : i32
    return %arg0, %c0_i32, %arg1 : i32, i32, i32
  }
  func.func @transform_3(%arg0: i32, %arg1: i32) -> (i32, i32, i32) {
    %c0_i32 = arith.constant 0 : i32
    %c0_i32_0 = arith.constant 0 : i32
    return %arg0, %c0_i32, %arg1 : i32, i32, i32
  }
}

module attributes {stable_mosaic.version = 11 : i64} {
  func.func @_linear_kernel(%arg0: i32, %arg1: i32, %arg2: i32, %arg3: memref<16x32xf32, #tpu.memory_space<vmem>>, %arg4: memref<32x32xf32, #tpu.memory_space<vmem>>, %arg5: memref<16x32xf32, #tpu.memory_space<vmem>>, %arg6: memref<16x32xf32, #tpu.memory_space<vmem>>) attributes {dimension_semantics = [#tpu.dimension_semantics<parallel>, #tpu.dimension_semantics<parallel>, #tpu.dimension_semantics<arbitrary>], iteration_bounds = array<i64: 1, 1, 1>, scalar_prefetch = 0 : i64, scratch_operands = 1 : i64, tpu.core_type = #tpu.core_type<tc>, window_params = [{transform_indices = @transform_0, window_bounds = array<i64: 16, 32>}, {transform_indices = @transform_1, window_bounds = array<i64: 32, 32>}, {transform_indices = @transform_2, window_bounds = array<i64: 16, 32>}]} {
    %c0_i32 = arith.constant 0 : i32
    %0 = arith.cmpi eq, %arg2, %c0_i32 : i32
    %1 = arith.extui %0 : i1 to i32
    %c0_i32_0 = arith.constant 0 : i32
    %2 = arith.cmpi ne, %1, %c0_i32_0 : i32
    scf.if %2 {
      %cst_10 = arith.constant 0.000000e+00 : f32
      %12 = vector.broadcast %cst_10 : f32 to vector<16x32xf32>
      %c0_11 = arith.constant 0 : index
      %c0_12 = arith.constant 0 : index
      %13 = vector.load %arg6[%c0_11, %c0_12] : memref<16x32xf32, #tpu.memory_space<vmem>>, vector<16x32xf32>
      tpu.vector_store %arg6[%c0_11, %c0_12], %12 {strides = array<i32>} : memref<16x32xf32, #tpu.memory_space<vmem>>, vector<16x32xf32>,
    } else {
    }
    %c0 = arith.constant 0 : index
    %c0_1 = arith.constant 0 : index
    %3 = vector.load %arg6[%c0, %c0_1] : memref<16x32xf32, #tpu.memory_space<vmem>>, vector<16x32xf32>
    %c0_2 = arith.constant 0 : index
    %c0_3 = arith.constant 0 : index
    %4 = vector.load %arg3[%c0_2, %c0_3] : memref<16x32xf32, #tpu.memory_space<vmem>>, vector<16x32xf32>
    %c0_4 = arith.constant 0 : index
    %c0_5 = arith.constant 0 : index
    %5 = vector.load %arg4[%c0_4, %c0_5] : memref<32x32xf32, #tpu.memory_space<vmem>>, vector<32x32xf32>
    %cst = arith.constant dense<0.000000e+00> : vector<16x32xf32>
    %6 = tpu.matmul %4, %5, %cst {dimension_numbers = #tpu.dot_dimension_numbers<[1], [0], [0], [1], [0, 0, 1, 1], [], []>} : vector<16x32xf32>, vector<32x32xf32>, vector<16x32xf32> -> vector<16x32xf32>
    %7 = arith.addf %3, %6 : vector<16x32xf32>
    %c0_6 = arith.constant 0 : index
    %c0_7 = arith.constant 0 : index
    %8 = vector.load %arg6[%c0_6, %c0_7] : memref<16x32xf32, #tpu.memory_space<vmem>>, vector<16x32xf32>
    tpu.vector_store %arg6[%c0_6, %c0_7], %7 {strides = array<i32>} : memref<16x32xf32, #tpu.memory_space<vmem>>, vector<16x32xf32>,
    %c0_i32_8 = arith.constant 0 : i32
    %9 = arith.cmpi eq, %arg2, %c0_i32_8 : i32
    %10 = arith.extui %9 : i1 to i32
    %c0_i32_9 = arith.constant 0 : i32
    %11 = arith.cmpi ne, %10, %c0_i32_9 : i32
    scf.if %11 {
      %c0_10 = arith.constant 0 : index
      %c0_11 = arith.constant 0 : index
      %12 = vector.load %arg6[%c0_10, %c0_11] : memref<16x32xf32, #tpu.memory_space<vmem>>, vector<16x32xf32>
      %c0_12 = arith.constant 0 : index
      %c0_13 = arith.constant 0 : index
      %13 = vector.load %arg5[%c0_12, %c0_13] : memref<16x32xf32, #tpu.memory_space<vmem>>, vector<16x32xf32>
      tpu.vector_store %arg5[%c0_12, %c0_13], %12 {strides = array<i32>} : memref<16x32xf32, #tpu.memory_space<vmem>>, vector<16x32xf32>,
    } else {
    }
    return
  }
  func.func @transform_0(%arg0: i32, %arg1: i32, %arg2: i32) -> (i32, i32) {
    %c0_i32 = arith.constant 0 : i32
    return %arg0, %arg2 : i32, i32
  }
  func.func @transform_1(%arg0: i32, %arg1: i32, %arg2: i32) -> (i32, i32) {
    %c0_i32 = arith.constant 0 : i32
    return %arg2, %arg1 : i32, i32
  }
  func.func @transform_2(%arg0: i32, %arg1: i32, %arg2: i32) -> (i32, i32) {
    %c0_i32 = arith.constant 0 : i32
    return %arg0, %arg1 : i32, i32
  }
}

</mosaic_0001>

<llo_original>
// kernel: multi_head_attention.5
$region0: #{multi_head_attention.5}
  #allocation0 [shape = 'u32[]', space=smem, size = 0x4, offset = 0x4, fixed_abs, tag = 'smem constant byte address 0x4 - core index']
  #allocation1 [shape = 'u32[72,128]{1,0:T(1,128)}', space=vmem, size = 0x9000, scoped, tag = 'internal scratch']
  #allocation2 [shape = 'f32[16,32]{1,0:T(8,128)}', space=vmem, size = 0x2000, scoped, tag = 'scratch operand']
  %s0 = inlined_call_operand.vmem [shape: f32[16,32], index: 0, kind: input, shape index: {}]
  %s1 = inlined_call_operand.vmem [shape: f32[32,32], index: 1, kind: input, shape index: {}]
  %s2 = inlined_call_operand.vmem [shape: f32[16,32], index: 2, kind: output, shape index: {}]
  %s3 = sld [smem:[#allocation0]]
  $region26: #{multi_head_attention.5} parent=0
    _
  %s5 = ssub.s32 1, %s3
  %s6 = scalar_select 0, %s5, %s3
  // Predicated region
  $region2: #{multi_head_attention.5} parent=0 // pred_check
    _
  $region3: #{multi_head_attention.5} parent=0 // pred_check_branch
    %8 = sbr.rel (0) target = $region5
  $region4: #{multi_head_attention.5} parent=0 // pred_region
    _
  $region5: #{multi_head_attention.5} parent=0 // pred_fallthru
    _
  // Predicated region
  $region6: #{multi_head_attention.5} parent=0 // pred_check
    _
  $region7: #{multi_head_attention.5} parent=0 // pred_check_branch
    %10 = sbr.rel (0) target = $region9
  $region8: #{multi_head_attention.5} parent=0 // pred_region
    _
  $region9: #{multi_head_attention.5} parent=0 // pred_fallthru
    _
  %p11 = scmp.eq.s32.totalorder 0, 0
  // Predicated region
  $region10: #{multi_head_attention.5} parent=0 // pred_check
    %p12 = pneg %p11
  $region11: #{multi_head_attention.5} parent=0 // pred_check_branch
    %14 = sbr.rel (%p12) target = $region13
  $region12: #{multi_head_attention.5} parent=0 // pred_region
    %vm15 = vcmask 261120
    %16 = vst.msk [vmem:[#allocation2] sm:$0xff] %vm15, 0.0
    %17 = vst.msk [vmem:[#allocation2 + $0x8] sm:$0xff] %vm15, 0.0
  $region13: #{multi_head_attention.5} parent=0 // pred_fallthru
    _
  %v18 = vld [vmem:[#allocation2] sm:$0xff]
  %v19 = vld [vmem:[#allocation2 + $0x8] sm:$0xff]
  %v20 = vld [vmem:[%s0] sm:$0xff]
  %v21 = vld [vmem:[%s0 + $0x8] sm:$0xff]
  %v22 = vld [vmem:[%s1] sm:$0xff]
  %v23 = vld [vmem:[%s1 + $0x8] sm:$0xff]
  %v24 = vld [vmem:[%s1 + $0x10] sm:$0xff]
  %v25 = vld [vmem:[%s1 + $0x18] sm:$0xff]
  %vm26 = vcmask 261120
  %v28 = vsel %vm26, %v20, 0
  %v31 = vsel %vm26, %v21, 0
  %33 = vmatpush.msra.mxu0 0.0
  %34 = vmatpush.msra.mxu0 0.0
  %35 = vmatpush.msra.mxu0 0.0
  %36 = vmatpush.msra.mxu0 0.0
  %37 = vmatpush.msra.mxu0 0.0
  %38 = vmatpush.msra.mxu0 0.0
  %39 = vmatpush.msra.mxu0 0.0
  %40 = vmatpush.msra.mxu0 0.0
  %41 = vmatpush.msra.mxu0 0.0
  %42 = vmatpush.msra.mxu0 0.0
  %43 = vmatpush.msra.mxu0 0.0
  %44 = vmatpush.msra.mxu0 0.0
  %45 = vmatpush.msra.mxu0 %v25
  %46 = vmatpush.msra.mxu0 %v24
  %47 = vmatpush.msra.mxu0 %v23
  %48 = vmatpush.msra.mxu0 %v22
  %49 = vmatmul.f32.gmra.mxu0 %v28
  %v50 = vpop.f32.mrf.mxu0
  %v51 = vadd.f32 0.0, %v50
  %52 = vmatmul.f32.gmra.mxu0 %v31
  %v53 = vpop.f32.mrf.mxu0
  %v54 = vadd.f32 0.0, %v53
  %55 = vdwg.mxu0
  %v56 = vadd.f32 %v18, %v51
  %v57 = vadd.f32 %v19, %v54
  %58 = vst.msk [vmem:[#allocation2] sm:$0xff] %vm26, %v56
  %59 = vst.msk [vmem:[#allocation2 + $0x8] sm:$0xff] %vm26, %v57
  // Predicated region
  $region14: #{multi_head_attention.5} parent=0 // pred_check
    %p60 = pneg %p11
  $region15: #{multi_head_attention.5} parent=0 // pred_check_branch
    %62 = sbr.rel (%p60) target = $region17
  $region16: #{multi_head_attention.5} parent=0 // pred_region
    %v63 = vld [vmem:[#allocation2] sm:$0xff]
    %v64 = vld [vmem:[#allocation2 + $0x8] sm:$0xff]
    %65 = vst.msk [vmem:[%s2] sm:$0xff] %vm26, %v63
    %66 = vst.msk [vmem:[%s2 + $0x8] sm:$0xff] %vm26, %v64
  $region17: #{multi_head_attention.5} parent=0 // pred_fallthru
    _
  // Predicated region
  $region18: #{multi_head_attention.5} parent=0 // pred_check
    _
  $region19: #{multi_head_attention.5} parent=0 // pred_check_branch
    %68 = sbr.rel (0) target = $region21
  $region20: #{multi_head_attention.5} parent=0 // pred_region
    _
  $region21: #{multi_head_attention.5} parent=0 // pred_fallthru
    _
  // Predicated region
  $region22: #{multi_head_attention.5} parent=0 // pred_check
    _
  $region23: #{multi_head_attention.5} parent=0 // pred_check_branch
    %70 = sbr.rel (0) target = $region25
  $region24: #{multi_head_attention.5} parent=0 // pred_region
    _
  $region25: #{multi_head_attention.5} parent=0 // pred_fallthru
    _

// kernel: multi_head_attention.9
$region0: #{multi_head_attention.9}
  #allocation0 [shape = 'u32[]', space=smem, size = 0x4, offset = 0x4, fixed_abs, tag = 'smem constant byte address 0x4 - core index']
  #allocation1 [shape = 'u32[72,128]{1,0:T(1,128)}', space=vmem, size = 0x9000, scoped, tag = 'internal scratch']
  #allocation2 [shape = 'f32[16,32]{1,0:T(8,128)}', space=vmem, size = 0x2000, scoped, tag = 'scratch operand']
  %s0 = inlined_call_operand.vmem [shape: f32[16,32], index: 0, kind: input, shape index: {}]
  %s1 = inlined_call_operand.vmem [shape: f32[32,32], index: 1, kind: input, shape index: {}]
  %s2 = inlined_call_operand.hbm [shape: f32[16,32], index: 2, kind: output, shape index: {}]
  %s3 = sld [smem:[#allocation0]]
  $region26: #{multi_head_attention.9} parent=0
    _
  %s5 = ssub.s32 1, %s3
  %s6 = scalar_select 0, %s5, %s3
  $region1: #{multi_head_attention.9} parent=0
    #allocation3 [shape = 'u8[8192]{0}', space=vmem, size = 0x2000, scoped, tag = 'output window, operand 0, single buffered']
    #allocation4 [shape = 's32[1]{0}', space=sflag, size = 0x4, scoped, tag = 'scoped memory for multi_head_attention.9']
    %7 = vsyncpa [#allocation4], 0
    // Predicated region
    $region2: #{multi_head_attention.9} parent=1 // pred_check
      _
    $region3: #{multi_head_attention.9} parent=1 // pred_check_branch
      %9 = sbr.rel (0) target = $region5
    $region4: #{multi_head_attention.9} parent=1 // pred_region
      _
    $region5: #{multi_head_attention.9} parent=1 // pred_fallthru
      _
    // Predicated region
    $region6: #{multi_head_attention.9} parent=1 // pred_check
      _
    $region7: #{multi_head_attention.9} parent=1 // pred_check_branch
      %11 = sbr.rel (0) target = $region9
    $region8: #{multi_head_attention.9} parent=1 // pred_region
      _
    $region9: #{multi_head_attention.9} parent=1 // pred_fallthru
      _
    %p12 = scmp.eq.s32.totalorder 0, 0
    // Predicated region
    $region10: #{multi_head_attention.9} parent=1 // pred_check
      %p13 = pneg %p12
    $region11: #{multi_head_attention.9} parent=1 // pred_check_branch
      %15 = sbr.rel (%p13) target = $region13
    $region12: #{multi_head_attention.9} parent=1 // pred_region
      %vm16 = vcmask 261120
      %17 = vst.msk [vmem:[#allocation2] sm:$0xff] %vm16, 0.0
      %18 = vst.msk [vmem:[#allocation2 + $0x8] sm:$0xff] %vm16, 0.0
    $region13: #{multi_head_attention.9} parent=1 // pred_fallthru
      _
    %v19 = vld [vmem:[#allocation2] sm:$0xff]
    %v20 = vld [vmem:[#allocation2 + $0x8] sm:$0xff]
    %v21 = vld [vmem:[%s0] sm:$0xff]
    %v22 = vld [vmem:[%s0 + $0x8] sm:$0xff]
    %v23 = vld [vmem:[%s1] sm:$0xff]
    %v24 = vld [vmem:[%s1 + $0x8] sm:$0xff]
    %v25 = vld [vmem:[%s1 + $0x10] sm:$0xff]
    %v26 = vld [vmem:[%s1 + $0x18] sm:$0xff]
    %vm27 = vcmask 261120
    %v29 = vsel %vm27, %v21, 0
    %v32 = vsel %vm27, %v22, 0
    %34 = vmatpush.msra.mxu0 0.0
    %35 = vmatpush.msra.mxu0 0.0
    %36 = vmatpush.msra.mxu0 0.0
    %37 = vmatpush.msra.mxu0 0.0
    %38 = vmatpush.msra.mxu0 0.0
    %39 = vmatpush.msra.mxu0 0.0
    %40 = vmatpush.msra.mxu0 0.0
    %41 = vmatpush.msra.mxu0 0.0
    %42 = vmatpush.msra.mxu0 0.0
    %43 = vmatpush.msra.mxu0 0.0
    %44 = vmatpush.msra.mxu0 0.0
    %45 = vmatpush.msra.mxu0 0.0
    %46 = vmatpush.msra.mxu0 %v26
    %47 = vmatpush.msra.mxu0 %v25
    %48 = vmatpush.msra.mxu0 %v24
    %49 = vmatpush.msra.mxu0 %v23
    %50 = vmatmul.f32.gmra.mxu0 %v29
    %v51 = vpop.f32.mrf.mxu0
    %v52 = vadd.f32 0.0, %v51
    %53 = vmatmul.f32.gmra.mxu0 %v32
    %v54 = vpop.f32.mrf.mxu0
    %v55 = vadd.f32 0.0, %v54
    %56 = vdwg.mxu0
    %v57 = vadd.f32 %v19, %v52
    %v58 = vadd.f32 %v20, %v55
    %59 = vst.msk [vmem:[#allocation2] sm:$0xff] %vm27, %v57
    %60 = vst.msk [vmem:[#allocation2 + $0x8] sm:$0xff] %vm27, %v58
    // Predicated region
    $region14: #{multi_head_attention.9} parent=1 // pred_check
      %p61 = pneg %p12
    $region15: #{multi_head_attention.9} parent=1 // pred_check_branch
      %63 = sbr.rel (%p61) target = $region17
    $region16: #{multi_head_attention.9} parent=1 // pred_region
      %v64 = vld [vmem:[#allocation2] sm:$0xff]
      %v65 = vld [vmem:[#allocation2 + $0x8] sm:$0xff]
      %66 = vst.msk [vmem:[#allocation3] sm:$0xff] %vm27, %v64
      %67 = vst.msk [vmem:[#allocation3 + $0x8] sm:$0xff] %vm27, %v65
    $region17: #{multi_head_attention.9} parent=1 // pred_fallthru
      _
    // Predicated region
    $region18: #{multi_head_attention.9} parent=1 // pred_check
      _
    $region19: #{multi_head_attention.9} parent=1 // pred_check_branch
      %69 = sbr.rel (0) target = $region21
    $region20: #{multi_head_attention.9} parent=1 // pred_region
      %71 = vsyncadd [#allocation4], 0
      %s72 = sshll.u32 [#allocation3], 4
      %s73 = int_to_ptr.vmem [resolvable:$true] %s72
      %s74 = sshll.u32 %s2, 4
      %s75 = int_to_ptr.hbm [resolvable:$true] %s74
      %80 = dma.vmem_to_hbm [thread:$0]  %s73, 256, %s75, [#allocation4], 128, 128, 8
    $region21: #{multi_head_attention.9} parent=1 // pred_fallthru
      _
    // Predicated region
    $region22: #{multi_head_attention.9} parent=1 // pred_check
      _
    $region23: #{multi_head_attention.9} parent=1 // pred_check_branch
      %82 = sbr.rel (0) target = $region25
    $region24: #{multi_head_attention.9} parent=1 // pred_region
      %84 = dma.done [#allocation4], 256
    $region25: #{multi_head_attention.9} parent=1 // pred_fallthru
      _
    %85 = vsyncpa [#allocation4], 1

// kernel: multi_head_attention.8
$region0: #{multi_head_attention.8}
  #allocation0 [shape = 'u32[]', space=smem, size = 0x4, offset = 0x4, fixed_abs, tag = 'smem constant byte address 0x4 - core index']
  #allocation1 [shape = 'u32[72,128]{1,0:T(1,128)}', space=vmem, size = 0x9000, scoped, tag = 'internal scratch']
  %s0 = inlined_call_operand.vmem [shape: f32[2,8,32], index: 0, kind: input, shape index: {}]
  %s1 = inlined_call_operand.vmem [shape: f32[2,8,32], index: 1, kind: input, shape index: {}]
  %s2 = inlined_call_operand.vmem [shape: f32[2,8,32], index: 2, kind: input, shape index: {}]
  %s3 = inlined_call_operand.vmem [shape: f32[2,8,32], index: 3, kind: output, shape index: {}]
  %s4 = sld [smem:[#allocation0]]
  $region45: #{multi_head_attention.8} parent=0
    _
  %s6 = ssub.s32 1, %s4
  %s7 = scalar_select 0, %s6, %s4
  loop: start=0, step=1, limit=4
  $region2: #{multi_head_attention.8} parent=0 // loop_pre_header
    _
  $region3: #{multi_head_attention.8} parent=0 // loop_header
    %s9 = sphi 0, %s13
    %p10 = scmp.ge.s32.totalorder %s9, 4
    %s16 = sphi 0, %s28
    %s17 = sphi 0, %s24
    %s18 = sphi 0, %s16
    %s19 = sphi 0, %s17
    %s20 = sphi 0, %s18
    %s21 = sphi 0, %s19
    %s33 = sphi 0, %s35
    %s36 = sphi 0, %s33
    %s37 = sphi 0, %s36
    %s53 = sphi 0, %s37
    %s61 = sphi 0, %s63
    %s64 = sphi 0, %s61
    %s65 = sphi 0, %s64
    %s81 = sphi 0, %s65
    %s89 = sphi 0, %s91
    %s92 = sphi 0, %s89
    %s93 = sphi 0, %s92
    %s109 = sphi 0, %s93
    %s117 = sphi 0, %s119
    %s120 = sphi 0, %s117
    %s121 = sphi 0, %s120
    %s137 = sphi 0, %s121
  $region4: #{multi_head_attention.8} parent=0 // loop_header_branch
    %12 = sbr.rel (%p10) target = $region8
  $region5: #{multi_head_attention.8} parent=0 // loop_body
    %s14 = ssub.s32 %s9, 1
    %s15 = ssub.s32 %s9, 2
    %s22 = sadd.s32 1, %s17
    %p23 = scmp.ge.s32.totalorder %s22, 1
    %s24 = scalar_select %p23, 0, %s22
    %s25 = sadd.s32 1, %s16
    %s26 = scalar_select %p23, %s25, %s16
    %p27 = scmp.ge.s32.totalorder %s26, 2
    %s28 = scalar_select %p27, 0, %s26
    %s29 = ssub.s32 %s16, %s28
    %s30 = ssub.s32 %s17, %s24
    %s31 = sor.u32 %s29, %s30
    %p32 = scmp.eq.s32.totalorder %s31, 0
    %s34 = sadd.s32 %s33, 1
    %s35 = scalar_select %p32, %s33, %s34
    %p38 = pneg %p32
    %p39 = scmp.eq.s32.totalorder %s9, 1
    %p40 = por %p38, %p39
    %p41 = scmp.ne.s32.totalorder %s33, %s36
    %p42 = scmp.eq.s32.totalorder %s9, 0
    %p43 = por %p41, %p42
    %p44 = scmp.ne.s32.totalorder %s33, %s36
    %p45 = scmp.eq.s32.totalorder %s14, 1
    %p46 = por %p44, %p45
    %p47 = scmp.ne.s32.totalorder %s36, %s37
    %p48 = scmp.eq.s32.totalorder %s14, 0
    %p49 = por %p47, %p48
    %p50 = scmp.ne.s32.totalorder %s36, %s37
    %p51 = scmp.eq.s32.totalorder %s15, 1
    %p52 = por %p50, %p51
    %p54 = scmp.ne.s32.totalorder %s37, %s53
    %p55 = scmp.eq.s32.totalorder %s15, 0
    %p56 = por %p54, %p55
    %s57 = ssub.s32 %s16, %s28
    %s58 = ssub.s32 %s17, %s24
    %s59 = sor.u32 %s57, %s58
    %p60 = scmp.eq.s32.totalorder %s59, 0
    %s62 = sadd.s32 %s61, 1
    %s63 = scalar_select %p60, %s61, %s62
    %p66 = pneg %p60
    %p67 = scmp.eq.s32.totalorder %s9, 1
    %p68 = por %p66, %p67
    %p69 = scmp.ne.s32.totalorder %s61, %s64
    %p70 = scmp.eq.s32.totalorder %s9, 0
    %p71 = por %p69, %p70
    %p72 = scmp.ne.s32.totalorder %s61, %s64
    %p73 = scmp.eq.s32.totalorder %s14, 1
    %p74 = por %p72, %p73
    %p75 = scmp.ne.s32.totalorder %s64, %s65
    %p76 = scmp.eq.s32.totalorder %s14, 0
    %p77 = por %p75, %p76
    %p78 = scmp.ne.s32.totalorder %s64, %s65
    %p79 = scmp.eq.s32.totalorder %s15, 1
    %p80 = por %p78, %p79
    %p82 = scmp.ne.s32.totalorder %s65, %s81
    %p83 = scmp.eq.s32.totalorder %s15, 0
    %p84 = por %p82, %p83
    %s85 = ssub.s32 %s16, %s28
    %s86 = ssub.s32 %s17, %s24
    %s87 = sor.u32 %s85, %s86
    %p88 = scmp.eq.s32.totalorder %s87, 0
    %s90 = sadd.s32 %s89, 1
    %s91 = scalar_select %p88, %s89, %s90
    %p94 = pneg %p88
    %p95 = scmp.eq.s32.totalorder %s9, 1
    %p96 = por %p94, %p95
    %p97 = scmp.ne.s32.totalorder %s89, %s92
    %p98 = scmp.eq.s32.totalorder %s9, 0
    %p99 = por %p97, %p98
    %p100 = scmp.ne.s32.totalorder %s89, %s92
    %p101 = scmp.eq.s32.totalorder %s14, 1
    %p102 = por %p100, %p101
    %p103 = scmp.ne.s32.totalorder %s92, %s93
    %p104 = scmp.eq.s32.totalorder %s14, 0
    %p105 = por %p103, %p104
    %p106 = scmp.ne.s32.totalorder %s92, %s93
    %p107 = scmp.eq.s32.totalorder %s15, 1
    %p108 = por %p106, %p107
    %p110 = scmp.ne.s32.totalorder %s93, %s109
    %p111 = scmp.eq.s32.totalorder %s15, 0
    %p112 = por %p110, %p111
    %s113 = ssub.s32 %s16, %s28
    %s114 = ssub.s32 %s17, %s24
    %s115 = sor.u32 %s113, %s114
    %p116 = scmp.eq.s32.totalorder %s115, 0
    %s118 = sadd.s32 %s117, 1
    %s119 = scalar_select %p116, %s117, %s118
    %p122 = pneg %p116
    %p123 = scmp.eq.s32.totalorder %s9, 1
    %p124 = por %p122, %p123
    %p125 = scmp.ne.s32.totalorder %s117, %s120
    %p126 = scmp.eq.s32.totalorder %s9, 0
    %p127 = por %p125, %p126
    %p128 = scmp.ne.s32.totalorder %s117, %s120
    %p129 = scmp.eq.s32.totalorder %s14, 1
    %p130 = por %p128, %p129
    %p131 = scmp.ne.s32.totalorder %s120, %s121
    %p132 = scmp.eq.s32.totalorder %s14, 0
    %p133 = por %p131, %p132
    %p134 = scmp.ne.s32.totalorder %s120, %s121
    %p135 = scmp.eq.s32.totalorder %s15, 1
    %p136 = por %p134, %p135
    %p138 = scmp.ne.s32.totalorder %s121, %s137
    %p139 = scmp.eq.s32.totalorder %s15, 0
    %p140 = por %p138, %p139
    %p141 = scmp.le.s32.totalorder 1, %s9
    %p142 = scmp.lt.s32.totalorder %s9, 3
    %p143 = pnand %p141, %p142
    %p144 = pneg %p143
    // Predicated region
    $region9: #{multi_head_attention.8} parent=5 // pred_check
      _
    $region10: #{multi_head_attention.8} parent=5 // pred_check_branch
      %146 = sbr.rel (%p143) target = $region12
    $region11: #{multi_head_attention.8} parent=5 // pred_region
      %s147 = ssub.s32 %s9, 1
    $region12: #{multi_head_attention.8} parent=5 // pred_fallthru
      _
    %p148 = scmp.lt.s32.totalorder %s9, 2
    // Predicated region
    $region13: #{multi_head_attention.8} parent=5 // pred_check
      %p149 = pneg %p148
    $region14: #{multi_head_attention.8} parent=5 // pred_check_branch
      %151 = sbr.rel (%p149) target = $region16
    $region15: #{multi_head_attention.8} parent=5 // pred_region
      // Predicated region
      $region17: #{multi_head_attention.8} parent=15 // pred_check
        %p152 = pneg %p43
      $region18: #{multi_head_attention.8} parent=15 // pred_check_branch
        %154 = sbr.rel (%p152) target = $region20
      $region19: #{multi_head_attention.8} parent=15 // pred_region
        %p155 = scmp.lt.s32.totalorder %s16, 1
        %s156 = scalar_select %p155, %s16, 1
        %p157 = scmp.lt.s32.totalorder %s17, 0
        %s158 = scalar_select %p157, %s17, 0
        %s159 = sadd.s32 %s158, %s156
        %s160 = smul.addr %s159, 8
        %s161 = scalar_lea.vmem %s0, %s160
      $region20: #{multi_head_attention.8} parent=15 // pred_fallthru
        _
      // Predicated region
      $region21: #{multi_head_attention.8} parent=15 // pred_check
        %p162 = pneg %p71
      $region22: #{multi_head_attention.8} parent=15 // pred_check_branch
        %164 = sbr.rel (%p162) target = $region24
      $region23: #{multi_head_attention.8} parent=15 // pred_region
        %p165 = scmp.lt.s32.totalorder %s16, 1
        %s166 = scalar_select %p165, %s16, 1
        %p167 = scmp.lt.s32.totalorder %s17, 0
        %s168 = scalar_select %p167, %s17, 0
        %s169 = sadd.s32 %s168, %s166
        %s170 = smul.addr %s169, 8
        %s171 = scalar_lea.vmem %s1, %s170
      $region24: #{multi_head_attention.8} parent=15 // pred_fallthru
        _
      // Predicated region
      $region25: #{multi_head_attention.8} parent=15 // pred_check
        %p172 = pneg %p99
      $region26: #{multi_head_attention.8} parent=15 // pred_check_branch
        %174 = sbr.rel (%p172) target = $region28
      $region27: #{multi_head_attention.8} parent=15 // pred_region
        %p175 = scmp.lt.s32.totalorder %s16, 1
        %s176 = scalar_select %p175, %s16, 1
        %p177 = scmp.lt.s32.totalorder %s17, 0
        %s178 = scalar_select %p177, %s17, 0
        %s179 = sadd.s32 %s178, %s176
        %s180 = smul.addr %s179, 8
        %s181 = scalar_lea.vmem %s2, %s180
      $region28: #{multi_head_attention.8} parent=15 // pred_fallthru
        _
    $region16: #{multi_head_attention.8} parent=5 // pred_fallthru
      _
    %p182 = scmp.le.s32.totalorder 1, %s9
    %p183 = scmp.lt.s32.totalorder %s9, 3
    %p184 = pnand %p182, %p183
    %p185 = pneg %p184
    // Predicated region
    $region29: #{multi_head_attention.8} parent=5 // pred_check
      _
    $region30: #{multi_head_attention.8} parent=5 // pred_check_branch
      %187 = sbr.rel (%p184) target = $region32
    $region31: #{multi_head_attention.8} parent=5 // pred_region
      %s188 = ssub.s32 %s9, 1
      %p189 = scmp.lt.s32.totalorder %s18, 1
      %s190 = scalar_select %p189, %s18, 1
      %p191 = scmp.lt.s32.totalorder %s19, 0
      %s192 = scalar_select %p191, %s19, 0
      %s193 = sadd.s32 %s192, %s190
      %s194 = smul.addr %s193, 8
      %s195 = scalar_lea.vmem %s0, %s194
      %p196 = pneg %p49
      %p197 = pneg %p46
      %p198 = scmp.lt.s32.totalorder %s18, 1
      %s199 = scalar_select %p198, %s18, 1
      %p200 = scmp.lt.s32.totalorder %s19, 0
      %s201 = scalar_select %p200, %s19, 0
      %s202 = sadd.s32 %s201, %s199
      %s203 = smul.addr %s202, 8
      %s204 = scalar_lea.vmem %s1, %s203
      %p205 = pneg %p77
      %p206 = pneg %p74
      %p207 = scmp.lt.s32.totalorder %s18, 1
      %s208 = scalar_select %p207, %s18, 1
      %p209 = scmp.lt.s32.totalorder %s19, 0
      %s210 = scalar_select %p209, %s19, 0
      %s211 = sadd.s32 %s210, %s208
      %s212 = smul.addr %s211, 8
      %s213 = scalar_lea.vmem %s2, %s212
      %p214 = pneg %p105
      %p215 = pneg %p102
      %p216 = pneg %p133
      %p217 = pneg %p130
      %p218 = scmp.lt.s32.totalorder %s18, 1
      %s219 = scalar_select %p218, %s18, 1
      %p220 = scmp.lt.s32.totalorder %s19, 0
      %s221 = scalar_select %p220, %s19, 0
      %s222 = sadd.s32 %s221, %s219
      %s223 = smul.addr %s222, 8
      %s224 = scalar_lea.vmem %s3, %s223
      %p225 = scmp.lt.s32.totalorder %s18, 1
      %s226 = scalar_select %p225, %s18, 1
      %p227 = scmp.lt.s32.totalorder %s19, 0
      %s228 = scalar_select %p227, %s19, 0
      %s229 = sadd.s32 %s228, %s226
      %s230 = smul.addr %s229, 8
      %s231 = scalar_lea.vmem %s0, %s230
      %p232 = scmp.lt.s32.totalorder %s18, 1
      %s233 = scalar_select %p232, %s18, 1
      %p234 = scmp.lt.s32.totalorder %s19, 0
      %s235 = scalar_select %p234, %s19, 0
      %s236 = sadd.s32 %s235, %s233
      %s237 = smul.addr %s236, 8
      %s238 = scalar_lea.vmem %s1, %s237
      %p239 = scmp.lt.s32.totalorder %s18, 1
      %s240 = scalar_select %p239, %s18, 1
      %p241 = scmp.lt.s32.totalorder %s19, 0
      %s242 = scalar_select %p241, %s19, 0
      %s243 = sadd.s32 %s242, %s240
      %s244 = smul.addr %s243, 8
      %s245 = scalar_lea.vmem %s2, %s244
      %p246 = scmp.lt.s32.totalorder %s18, 1
      %s247 = scalar_select %p246, %s18, 1
      %p248 = scmp.lt.s32.totalorder %s19, 0
      %s249 = scalar_select %p248, %s19, 0
      %s250 = sadd.s32 %s249, %s247
      %s251 = smul.addr %s250, 8
      %s252 = scalar_lea.vmem %s3, %s251
      %v253 = vld [vmem:[%s231] sm:$0xff]
      %v254 = vld [vmem:[%s238] sm:$0xff]
      %v255 = vld [vmem:[%s245] sm:$0xff]
      %vm256 = vcmask 64512
      %v258 = vsel %vm256, %v253, 0
      %v261 = vsel %vm256, %v254, 0
      %263 = vmatpush.xpose.msra.mxu0 0.0
      %264 = vmatpush.xpose.msra.mxu0 0.0
      %265 = vmatpush.xpose.msra.mxu0 0.0
      %266 = vmatpush.xpose.msra.mxu0 0.0
      %267 = vmatpush.xpose.msra.mxu0 0.0
      %268 = vmatpush.xpose.msra.mxu0 0.0
      %269 = vmatpush.xpose.msra.mxu0 0.0
      %270 = vmatpush.xpose.msra.mxu0 0.0
      %271 = vmatpush.xpose.msra.mxu0 0.0
      %272 = vmatpush.xpose.msra.mxu0 0.0
      %273 = vmatpush.xpose.msra.mxu0 0.0
      %274 = vmatpush.xpose.msra.mxu0 0.0
      %275 = vmatpush.xpose.msra.mxu0 0.0
      %276 = vmatpush.xpose.msra.mxu0 0.0
      %277 = vmatpush.xpose.msra.mxu0 0.0
      %278 = vmatpush.xpose.msra.mxu0 %v261
      %279 = vmatmul.f32.gmra.mxu0 %v258
      %v280 = vpop.f32.mrf.mxu0
      %v281 = vadd.f32 0.0, %v280
      %282 = vdwg.mxu0
      %v283 = vmul.f32 %v281, 0.35355338
      %v284 = vsel %vm256, %v283, -inf
      %285 = vmax.xlane.f32.xlu0 %v284
      %v286 = vpop.xlane.xlu0 %285
      %v287 = vsub.f32 %v283, %v286
      %v288 = vmul.f32 %v287, 1.442695
      %v289 = vpow.pop %v288
      %v290 = vsel %vm256, %v289, 0.0
      %291 = vadd.xlane.f32.xlu0 %v290
      %v292 = vpop.xlane.xlu0 %291
      %v293 = vrcp.pop %v292
      %v294 = vmul.f32 %v289, %v293
      %v296 = vsel %vm256, %v294, 0
      %298 = vmatpush.msra.mxu0 0.0
      %299 = vmatpush.msra.mxu0 0.0
      %300 = vmatpush.msra.mxu0 0.0
      %301 = vmatpush.msra.mxu0 0.0
      %302 = vmatpush.msra.mxu0 0.0
      %303 = vmatpush.msra.mxu0 0.0
      %304 = vmatpush.msra.mxu0 0.0
      %305 = vmatpush.msra.mxu0 0.0
      %306 = vmatpush.msra.mxu0 0.0
      %307 = vmatpush.msra.mxu0 0.0
      %308 = vmatpush.msra.mxu0 0.0
      %309 = vmatpush.msra.mxu0 0.0
      %310 = vmatpush.msra.mxu0 0.0
      %311 = vmatpush.msra.mxu0 0.0
      %312 = vmatpush.msra.mxu0 0.0
      %313 = vmatpush.msra.mxu0 %v255
      %314 = vmatmul.f32.gmra.mxu0 %v296
      %v315 = vpop.f32.mrf.mxu0
      %v316 = vadd.f32 0.0, %v315
      %317 = vdwg.mxu0
      %318 = vrot.lane.b32.xlu0 %v253, 120
      %v319 = vpop.permute.xlu0 %318
      %320 = vrot.lane.b32.xlu0 %v254, 120
      %v321 = vpop.permute.xlu0 %320
      %v322 = vsel %vm256, %v319, 0
      %v324 = vsel %vm256, %v321, 0
      %326 = vmatpush.xpose.msra.mxu0 0.0
      %327 = vmatpush.xpose.msra.mxu0 0.0
      %328 = vmatpush.xpose.msra.mxu0 0.0
      %329 = vmatpush.xpose.msra.mxu0 0.0
      %330 = vmatpush.xpose.msra.mxu0 0.0
      %331 = vmatpush.xpose.msra.mxu0 0.0
      %332 = vmatpush.xpose.msra.mxu0 0.0
      %333 = vmatpush.xpose.msra.mxu0 0.0
      %334 = vmatpush.xpose.msra.mxu0 0.0
      %335 = vmatpush.xpose.msra.mxu0 0.0
      %336 = vmatpush.xpose.msra.mxu0 0.0
      %337 = vmatpush.xpose.msra.mxu0 0.0
      %338 = vmatpush.xpose.msra.mxu0 0.0
      %339 = vmatpush.xpose.msra.mxu0 0.0
      %340 = vmatpush.xpose.msra.mxu0 0.0
      %341 = vmatpush.xpose.msra.mxu0 %v324
      %342 = vmatmul.f32.gmra.mxu0 %v322
      %v343 = vpop.f32.mrf.mxu0
      %v344 = vadd.f32 0.0, %v343
      %345 = vdwg.mxu0
      %v346 = vmul.f32 %v344, 0.35355338
      %v347 = vsel %vm256, %v346, -inf
      %348 = vmax.xlane.f32.xlu0 %v347
      %v349 = vpop.xlane.xlu0 %348
      %v350 = vsub.f32 %v346, %v349
      %v351 = vmul.f32 %v350, 1.442695
      %v352 = vpow.pop %v351
      %v353 = vsel %vm256, %v352, 0.0
      %354 = vadd.xlane.f32.xlu0 %v353
      %v355 = vpop.xlane.xlu0 %354
      %v356 = vrcp.pop %v355
      %v357 = vmul.f32 %v352, %v356
      %359 = vrot.lane.b32.xlu0 %v255, 120
      %v360 = vpop.permute.xlu0 %359
      %v363 = vsel %vm256, %v357, 0
      %365 = vmatpush.msra.mxu0 0.0
      %366 = vmatpush.msra.mxu0 0.0
      %367 = vmatpush.msra.mxu0 0.0
      %368 = vmatpush.msra.mxu0 0.0
      %369 = vmatpush.msra.mxu0 0.0
      %370 = vmatpush.msra.mxu0 0.0
      %371 = vmatpush.msra.mxu0 0.0
      %372 = vmatpush.msra.mxu0 0.0
      %373 = vmatpush.msra.mxu0 0.0
      %374 = vmatpush.msra.mxu0 0.0
      %375 = vmatpush.msra.mxu0 0.0
      %376 = vmatpush.msra.mxu0 0.0
      %377 = vmatpush.msra.mxu0 0.0
      %378 = vmatpush.msra.mxu0 0.0
      %379 = vmatpush.msra.mxu0 0.0
      %380 = vmatpush.msra.mxu0 %v360
      %381 = vmatmul.f32.gmra.mxu0 %v363
      %v382 = vpop.f32.mrf.mxu0
      %v383 = vadd.f32 0.0, %v382
      %384 = vdwg.mxu0
      %385 = vrot.lane.b32.xlu0 %v253, 112
      %v386 = vpop.permute.xlu0 %385
      %387 = vrot.lane.b32.xlu0 %v254, 112
      %v388 = vpop.permute.xlu0 %387
      %v389 = vsel %vm256, %v386, 0
      %v391 = vsel %vm256, %v388, 0
      %393 = vmatpush.xpose.msra.mxu0 0.0
      %394 = vmatpush.xpose.msra.mxu0 0.0
      %395 = vmatpush.xpose.msra.mxu0 0.0
      %396 = vmatpush.xpose.msra.mxu0 0.0
      %397 = vmatpush.xpose.msra.mxu0 0.0
      %398 = vmatpush.xpose.msra.mxu0 0.0
      %399 = vmatpush.xpose.msra.mxu0 0.0
      %400 = vmatpush.xpose.msra.mxu0 0.0
      %401 = vmatpush.xpose.msra.mxu0 0.0
      %402 = vmatpush.xpose.msra.mxu0 0.0
      %403 = vmatpush.xpose.msra.mxu0 0.0
      %404 = vmatpush.xpose.msra.mxu0 0.0
      %405 = vmatpush.xpose.msra.mxu0 0.0
      %406 = vmatpush.xpose.msra.mxu0 0.0
      %407 = vmatpush.xpose.msra.mxu0 0.0
      %408 = vmatpush.xpose.msra.mxu0 %v391
      %409 = vmatmul.f32.gmra.mxu0 %v389
      %v410 = vpop.f32.mrf.mxu0
      %v411 = vadd.f32 0.0, %v410
      %412 = vdwg.mxu0
      %v413 = vmul.f32 %v411, 0.35355338
      %v414 = vsel %vm256, %v413, -inf
      %415 = vmax.xlane.f32.xlu0 %v414
      %v416 = vpop.xlane.xlu0 %415
      %v417 = vsub.f32 %v413, %v416
      %v418 = vmul.f32 %v417, 1.442695
      %v419 = vpow.pop %v418
      %v420 = vsel %vm256, %v419, 0.0
      %421 = vadd.xlane.f32.xlu0 %v420
      %v422 = vpop.xlane.xlu0 %421
      %v423 = vrcp.pop %v422
      %v424 = vmul.f32 %v419, %v423
      %425 = vrot.lane.b32.xlu0 %v255, 112
      %v426 = vpop.permute.xlu0 %425
      %v429 = vsel %vm256, %v424, 0
      %431 = vmatpush.msra.mxu0 0.0
      %432 = vmatpush.msra.mxu0 0.0
      %433 = vmatpush.msra.mxu0 0.0
      %434 = vmatpush.msra.mxu0 0.0
      %435 = vmatpush.msra.mxu0 0.0
      %436 = vmatpush.msra.mxu0 0.0
      %437 = vmatpush.msra.mxu0 0.0
      %438 = vmatpush.msra.mxu0 0.0
      %439 = vmatpush.msra.mxu0 0.0
      %440 = vmatpush.msra.mxu0 0.0
      %441 = vmatpush.msra.mxu0 0.0
      %442 = vmatpush.msra.mxu0 0.0
      %443 = vmatpush.msra.mxu0 0.0
      %444 = vmatpush.msra.mxu0 0.0
      %445 = vmatpush.msra.mxu0 0.0
      %446 = vmatpush.msra.mxu0 %v426
      %447 = vmatmul.f32.gmra.mxu0 %v429
      %v448 = vpop.f32.mrf.mxu0
      %v449 = vadd.f32 0.0, %v448
      %450 = vdwg.mxu0
      %451 = vrot.lane.b32.xlu0 %v253, 104
      %v452 = vpop.permute.xlu0 %451
      %453 = vrot.lane.b32.xlu0 %v254, 104
      %v454 = vpop.permute.xlu0 %453
      %v455 = vsel %vm256, %v452, 0
      %v457 = vsel %vm256, %v454, 0
      %459 = vmatpush.xpose.msra.mxu0 0.0
      %460 = vmatpush.xpose.msra.mxu0 0.0
      %461 = vmatpush.xpose.msra.mxu0 0.0
      %462 = vmatpush.xpose.msra.mxu0 0.0
      %463 = vmatpush.xpose.msra.mxu0 0.0
      %464 = vmatpush.xpose.msra.mxu0 0.0
      %465 = vmatpush.xpose.msra.mxu0 0.0
      %466 = vmatpush.xpose.msra.mxu0 0.0
      %467 = vmatpush.xpose.msra.mxu0 0.0
      %468 = vmatpush.xpose.msra.mxu0 0.0
      %469 = vmatpush.xpose.msra.mxu0 0.0
      %470 = vmatpush.xpose.msra.mxu0 0.0
      %471 = vmatpush.xpose.msra.mxu0 0.0
      %472 = vmatpush.xpose.msra.mxu0 0.0
      %473 = vmatpush.xpose.msra.mxu0 0.0
      %474 = vmatpush.xpose.msra.mxu0 %v457
      %475 = vmatmul.f32.gmra.mxu0 %v455
      %v476 = vpop.f32.mrf.mxu0
      %v477 = vadd.f32 0.0, %v476
      %478 = vdwg.mxu0
      %v479 = vmul.f32 %v477, 0.35355338
      %v480 = vsel %vm256, %v479, -inf
      %481 = vmax.xlane.f32.xlu0 %v480
      %v482 = vpop.xlane.xlu0 %481
      %v483 = vsub.f32 %v479, %v482
      %v484 = vmul.f32 %v483, 1.442695
      %v485 = vpow.pop %v484
      %v486 = vsel %vm256, %v485, 0.0
      %487 = vadd.xlane.f32.xlu0 %v486
      %v488 = vpop.xlane.xlu0 %487
      %v489 = vrcp.pop %v488
      %v490 = vmul.f32 %v485, %v489
      %491 = vrot.lane.b32.xlu0 %v255, 104
      %v492 = vpop.permute.xlu0 %491
      %v495 = vsel %vm256, %v490, 0
      %497 = vmatpush.msra.mxu0 0.0
      %498 = vmatpush.msra.mxu0 0.0
      %499 = vmatpush.msra.mxu0 0.0
      %500 = vmatpush.msra.mxu0 0.0
      %501 = vmatpush.msra.mxu0 0.0
      %502 = vmatpush.msra.mxu0 0.0
      %503 = vmatpush.msra.mxu0 0.0
      %504 = vmatpush.msra.mxu0 0.0
      %505 = vmatpush.msra.mxu0 0.0
      %506 = vmatpush.msra.mxu0 0.0
      %507 = vmatpush.msra.mxu0 0.0
      %508 = vmatpush.msra.mxu0 0.0
      %509 = vmatpush.msra.mxu0 0.0
      %510 = vmatpush.msra.mxu0 0.0
      %511 = vmatpush.msra.mxu0 0.0
      %512 = vmatpush.msra.mxu0 %v492
      %513 = vmatmul.f32.gmra.mxu0 %v495
      %v514 = vpop.f32.mrf.mxu0
      %v515 = vadd.f32 0.0, %v514
      %516 = vdwg.mxu0
      %518 = vrot.lane.b32.xlu0 %v383, 8
      %v519 = vpop.permute.xlu0 %518
      %522 = vrot.lane.b32.xlu0 %v449, 16
      %v523 = vpop.permute.xlu0 %522
      %526 = vrot.lane.b32.xlu0 %v515, 24
      %v527 = vpop.permute.xlu0 %526
      %v529 = vsel %vm256, %v316, %v519
      %vm530 = vcmask 130048
      %v531 = vsel %vm530, %v529, %v523
      %vm532 = vcmask 195584
      %v533 = vsel %vm532, %v531, %v527
      %vm534 = vcmask 261120
      %535 = vst.msk [vmem:[%s252] sm:$0xff] %vm534, %v533
      %p536 = scmp.lt.s32.totalorder %s18, 1
      %s537 = scalar_select %p536, %s18, 1
      %p538 = scmp.lt.s32.totalorder %s19, 0
      %s539 = scalar_select %p538, %s19, 0
      %s540 = sadd.s32 %s539, %s537
      %s541 = smul.addr %s540, 8
      %s542 = scalar_lea.vmem %s3, %s541
      // Predicated region
      $region33: #{multi_head_attention.8} parent=31 // pred_check
        %p543 = pneg %p130
      $region34: #{multi_head_attention.8} parent=31 // pred_check_branch
        %545 = sbr.rel (%p543) target = $region36
      $region35: #{multi_head_attention.8} parent=31 // pred_region
        _
      $region36: #{multi_head_attention.8} parent=31 // pred_fallthru
        _
    $region32: #{multi_head_attention.8} parent=5 // pred_fallthru
      _
    %p546 = scmp.le.s32.totalorder 2, %s9
    // Predicated region
    $region37: #{multi_head_attention.8} parent=5 // pred_check
      %p547 = pneg %p546
    $region38: #{multi_head_attention.8} parent=5 // pred_check_branch
      %549 = sbr.rel (%p547) target = $region40
    $region39: #{multi_head_attention.8} parent=5 // pred_region
      %s550 = ssub.s32 %s9, 2
      // Predicated region
      $region41: #{multi_head_attention.8} parent=39 // pred_check
        %p551 = pneg %p136
      $region42: #{multi_head_attention.8} parent=39 // pred_check_branch
        %553 = sbr.rel (%p551) target = $region44
      $region43: #{multi_head_attention.8} parent=39 // pred_region
        %p554 = scmp.lt.s32.totalorder %s20, 1
        %s555 = scalar_select %p554, %s20, 1
        %p556 = scmp.lt.s32.totalorder %s21, 0
        %s557 = scalar_select %p556, %s21, 0
        %s558 = sadd.s32 %s557, %s555
        %s559 = smul.addr %s558, 8
        %s560 = scalar_lea.vmem %s3, %s559
      $region44: #{multi_head_attention.8} parent=39 // pred_fallthru
        _
    $region40: #{multi_head_attention.8} parent=5 // pred_fallthru
      _
  $region6: #{multi_head_attention.8} parent=0 // loop_footer
    %s13 = sadd.s32 1, %s9
  $region7: #{multi_head_attention.8} parent=0 // loop_footer_branch
    %8 = sbr.rel target = $region3
  $region8: #{multi_head_attention.8} parent=0 // loop_exit
    _

</llo_original>
